<compile_context>
chip_gen: v7x
topology: tpu7x:2x2x1
jax: 0.10.0
libtpu: 0.0.40
codegen_flags: <defaults>
</compile_context>

<pallas_src>
import functools
import math

import jax
import jax.numpy as jnp
from jax.experimental import pallas as pl
from jax.experimental.pallas import tpu as pltpu


def _build_pe(max_seq_len: int, embed_dim: int) -> jnp.ndarray:
    """pe[pos, j] = sin(pos / 10000 ** (2*j / embed_dim)) for all columns j,
    exactly mirroring the PyTorch reference loop (sin for even AND odd cols)."""
    pos = jnp.arange(max_seq_len, dtype=jnp.float32)[:, None]           # (S, 1)
    j = jnp.arange(embed_dim, dtype=jnp.float32)[None, :]               # (1, D)
    inv_freq = jnp.power(jnp.float32(10000.0), -2.0 * j / embed_dim)    # (1, D)
    return jnp.sin(pos * inv_freq)                                      # (S, D)


def _pos_embed_kernel(x_ref, pe_ref, o_ref, *, scale):
    # Straight vreg-aligned VPU op on matching (1, TR, C) blocks (no broadcast).
    o_ref[...] = x_ref[...] * scale + pe_ref[...]


def _vmem_capacity_bytes() -> int:
    try:
        return int(pltpu.get_tpu_info().vmem_capacity_bytes)
    except Exception:
        return 64 * 1024 * 1024  # conservative fallback: v7x per-core VMEM


def positional_embedding(x: jnp.ndarray, pe_full: jnp.ndarray) -> jnp.ndarray:
    """x: (B, S, D); pe_full: (max_seq_len, D) with max_seq_len >= S."""
    B, S, D = x.shape
    max_seq_len = pe_full.shape[0]
    scale = float(math.sqrt(D))
    pe_full = pe_full.astype(x.dtype)   # no-op when dtypes already match

    LANE = 128
    if D % LANE == 0:
        # Natural layout is already lane-dense; avoid the pe[:S] HBM copy by
        # letting the BlockSpec index_map select rows out of the full buffer.
        R, C = S, D
        x_view = x
        if S % 8 == 0 or S == max_seq_len:
            pe_view = pe_full.reshape(1, max_seq_len, D)     # no slice copy
        else:
            pe_view = pe_full[:S].reshape(1, S, D)
    elif (S * D) % LANE == 0:
        # Re-view the (S, D) plane as (R, C) with C a large multiple of 128 so
        # output stores are unmasked, lane-dense vst (biggest single lever).
        C = max(c for c in range(LANE, min(S * D, 1024) + 1, LANE)
                if (S * D) % c == 0)
        R = (S * D) // C
        x_view = x.reshape(B, R, C)
        pe_view = pe_full[:S].reshape(1, R, C)
    else:
        # Fallback: correct but lane-sparse (masked stores). Rare shapes only.
        R, C = S, D
        x_view = x
        pe_view = pe_full[:S].reshape(1, S, D)

    # Row-tile size: keep the ~6 live double-buffered tiles (x, pe, out) well
    # inside the scoped-VMEM budget of whichever generation we are running on.
    itemsize = x.dtype.itemsize
    vmem_limit = min(_vmem_capacity_bytes() // 2, 64 * 1024 * 1024)
    tile_budget = vmem_limit // 2
    rows_cap = max(8, tile_budget // (6 * C * itemsize))
    if R <= rows_cap:
        TR = R
    else:
        TR = (rows_cap // 8) * 8          # multiple of 8 -> valid sublane tile

    num_r = pl.cdiv(R, TR)
    # Batch is the fastest grid axis: the shared pe tile index is unchanged
    # across consecutive steps, so its DMA is issued once per row-tile only.
    grid = (num_r, B)

    out_view = pl.pallas_call(
        functools.partial(_pos_embed_kernel, scale=scale),
        out_shape=jax.ShapeDtypeStruct((B, R, C), x.dtype),
        grid_spec=pltpu.PrefetchScalarGridSpec(
            num_scalar_prefetch=0,
            grid=grid,
            in_specs=[
                pl.BlockSpec((1, TR, C), lambda r, b: (b, r, 0)),   # x
                pl.BlockSpec((1, TR, C), lambda r, b: (0, r, 0)),   # pe (shared)
            ],
            out_specs=pl.BlockSpec((1, TR, C), lambda r, b: (b, r, 0)),
        ),
        compiler_params=pltpu.CompilerParams(
            dimension_semantics=("parallel", "parallel"),
            vmem_limit_bytes=int(vmem_limit),
        ),
        cost_estimate=pl.CostEstimate(
            flops=2 * B * S * D,
            transcendentals=0,
            bytes_accessed=(2 * B * S * D + S * D) * itemsize,
        ),
    )(x_view, pe_view)

    return out_view.reshape(B, S, D)


if __name__ == "__main__":
    max_seq_len = 16
    embed_dim = 32
    batch = 2
    seq = 8

    key = jax.random.PRNGKey(0)
    x = jax.random.normal(key, (batch, seq, embed_dim), dtype=jnp.float32)
    pe_full = _build_pe(max_seq_len, embed_dim)

    out = positional_embedding(x, pe_full)
    out = jax.block_until_ready(out)

    # reference check in plain JAX
    ref = x * math.sqrt(embed_dim) + pe_full[:seq, :][None, :, :]
    assert out.shape == (batch, seq, embed_dim)
    assert jnp.allclose(out, ref, atol=1e-5, rtol=1e-5)

    print("KERNEL_OK")
</pallas_src>

<mosaic_0001>
module attributes {stable_mosaic.version = 11 : i64} {
  func.func @_pos_embed_kernel(%arg0: i32, %arg1: i32, %arg2: memref<1x1x256xf32, #tpu.memory_space<vmem>>, %arg3: memref<1x1x256xf32, #tpu.memory_space<vmem>>, %arg4: memref<1x1x256xf32, #tpu.memory_space<vmem>>) attributes {dimension_semantics = [#tpu.dimension_semantics<parallel>, #tpu.dimension_semantics<parallel>], iteration_bounds = array<i64: 1, 2>, scalar_prefetch = 0 : i64, scratch_operands = 0 : i64, tpu.core_type = #tpu.core_type<tc>, window_params = [{transform_indices = @transform_0, window_bounds = array<i64: 1, 1, 256>}, {transform_indices = @transform_1, window_bounds = array<i64: 1, 1, 256>}, {transform_indices = @transform_2, window_bounds = array<i64: 1, 1, 256>}]} {
    %c0 = arith.constant 0 : index
    %c0_0 = arith.constant 0 : index
    %c0_1 = arith.constant 0 : index
    %0 = vector.load %arg2[%c0, %c0_0, %c0_1] : memref<1x1x256xf32, #tpu.memory_space<vmem>>, vector<1x1x256xf32>
    %cst = arith.constant 5.65685415 : f32
    %1 = vector.broadcast %cst : f32 to vector<1x1x256xf32>
    %2 = arith.mulf %0, %1 : vector<1x1x256xf32>
    %c0_2 = arith.constant 0 : index
    %c0_3 = arith.constant 0 : index
    %c0_4 = arith.constant 0 : index
    %3 = vector.load %arg3[%c0_2, %c0_3, %c0_4] : memref<1x1x256xf32, #tpu.memory_space<vmem>>, vector<1x1x256xf32>
    %4 = arith.addf %2, %3 : vector<1x1x256xf32>
    %c0_5 = arith.constant 0 : index
    %c0_6 = arith.constant 0 : index
    %c0_7 = arith.constant 0 : index
    %5 = vector.load %arg4[%c0_5, %c0_6, %c0_7] : memref<1x1x256xf32, #tpu.memory_space<vmem>>, vector<1x1x256xf32>
    tpu.vector_store %arg4[%c0_5, %c0_6, %c0_7], %4 {strides = array<i32>} : memref<1x1x256xf32, #tpu.memory_space<vmem>>, vector<1x1x256xf32>,
    return
  }
  func.func @transform_0(%arg0: i32, %arg1: i32) -> (i32, i32, i32) {
    %c0_i32 = arith.constant 0 : i32
    %c0_i32_0 = arith.constant 0 : i32
    return %arg1, %arg0, %c0_i32 : i32, i32, i32
  }
  func.func @transform_1(%arg0: i32, %arg1: i32) -> (i32, i32, i32) {
    %c0_i32 = arith.constant 0 : i32
    %c0_i32_0 = arith.constant 0 : i32
    %c0_i32_1 = arith.constant 0 : i32
    return %c0_i32, %arg0, %c0_i32_0 : i32, i32, i32
  }
  func.func @transform_2(%arg0: i32, %arg1: i32) -> (i32, i32, i32) {
    %c0_i32 = arith.constant 0 : i32
    %c0_i32_0 = arith.constant 0 : i32
    return %arg1, %arg0, %c0_i32 : i32, i32, i32
  }
}

</mosaic_0001>

<llo_original>
// kernel: tpu_custom_call.1
$region0: #{tpu_custom_call.1}
  #allocation0 [shape = 'u32[]', space=smem, size = 0x4, offset = 0x4, fixed_abs, tag = 'smem constant byte address 0x4 - core index']
  #allocation1 [shape = 'u32[144,128]{1,0:T(1,128)}', space=vmem, size = 0x12000, scoped, tag = 'internal scratch']
  %s0 = inlined_call_operand.hbm [shape: f32[2,1,256], index: 0, kind: input, shape index: {}]
  %s1 = inlined_call_operand.vmem [shape: f32[1,1,256], index: 1, kind: input, shape index: {}]
  %s2 = inlined_call_operand.hbm [shape: f32[2,1,256], index: 2, kind: output, shape index: {}]
  %s3 = sld [smem:[#allocation0]]
  $region45: #{tpu_custom_call.1} parent=0
    _
  %s5 = ssub.s32 1, %s3
  %s6 = scalar_select 0, %s5, %s3
  $region1: #{tpu_custom_call.1} parent=0
    #allocation2 [shape = 'u8[2048]{0}', space=vmem, size = 0x800, scoped, tag = 'input window, operand 0']
    #allocation3 [shape = 's32[2]{0}', space=sflag, size = 0x8, scoped, tag = 'scoped memory for tpu_custom_call.1']
    #allocation4 [shape = 's32[2]{0}', space=sflag, size = 0x8, scoped, tag = 'scoped memory for tpu_custom_call.1']
    #allocation5 [shape = 'u8[2048]{0}', space=vmem, size = 0x800, scoped, tag = 'output window, operand 0']
    %7 = vsyncpa [#allocation3], 0
    %s8 = scalar_lea.sflag [#allocation3], 1
    %9 = vsyncpa %s8, 0
    %10 = vsyncpa [#allocation4], 0
    %s11 = scalar_lea.sflag [#allocation4], 1
    %12 = vsyncpa %s11, 0
    loop: start=0, step=1, limit=4
    $region2: #{tpu_custom_call.1} parent=1 // loop_pre_header
      _
    $region3: #{tpu_custom_call.1} parent=1 // loop_header
      %s14 = sphi 0, %s18
      %p15 = scmp.ge.s32.totalorder %s14, 4
      %s21 = sphi 0, %s33
      %s22 = sphi 0, %s29
      %s23 = sphi 0, %s21
      %s24 = sphi 0, %s22
      %s25 = sphi 0, %s23
      %s26 = sphi 0, %s24
      %s38 = sphi 0, %s40
      %s41 = sphi 0, %s38
      %s42 = sphi 0, %s41
      %s58 = sphi 0, %s42
      %s64 = sphi 0, %s66
      %s67 = sphi 0, %s64
      %s68 = sphi 0, %s67
      %s84 = sphi 0, %s68
      %s92 = sphi 0, %s94
      %s95 = sphi 0, %s92
      %s96 = sphi 0, %s95
      %s112 = sphi 0, %s96
    $region4: #{tpu_custom_call.1} parent=1 // loop_header_branch
      %17 = sbr.rel (%p15) target = $region8
    $region5: #{tpu_custom_call.1} parent=1 // loop_body
      %s19 = ssub.s32 %s14, 1
      %s20 = ssub.s32 %s14, 2
      %s27 = sadd.s32 1, %s22
      %p28 = scmp.ge.s32.totalorder %s27, 2
      %s29 = scalar_select %p28, 0, %s27
      %s30 = sadd.s32 1, %s21
      %s31 = scalar_select %p28, %s30, %s21
      %p32 = scmp.ge.s32.totalorder %s31, 1
      %s33 = scalar_select %p32, 0, %s31
      %s34 = ssub.s32 %s22, %s29
      %s35 = ssub.s32 %s21, %s33
      %s36 = sor.u32 %s34, %s35
      %p37 = scmp.eq.s32.totalorder %s36, 0
      %s39 = sadd.s32 %s38, 1
      %s40 = scalar_select %p37, %s38, %s39
      %p43 = pneg %p37
      %p44 = scmp.eq.s32.totalorder %s14, 1
      %p45 = por %p43, %p44
      %p46 = scmp.ne.s32.totalorder %s38, %s41
      %p47 = scmp.eq.s32.totalorder %s14, 0
      %p48 = por %p46, %p47
      %p49 = scmp.ne.s32.totalorder %s38, %s41
      %p50 = scmp.eq.s32.totalorder %s19, 1
      %p51 = por %p49, %p50
      %p52 = scmp.ne.s32.totalorder %s41, %s42
      %p53 = scmp.eq.s32.totalorder %s19, 0
      %p54 = por %p52, %p53
      %p55 = scmp.ne.s32.totalorder %s41, %s42
      %p56 = scmp.eq.s32.totalorder %s20, 1
      %p57 = por %p55, %p56
      %p59 = scmp.ne.s32.totalorder %s42, %s58
      %p60 = scmp.eq.s32.totalorder %s20, 0
      %p61 = por %p59, %p60
      %s62 = ssub.s32 %s21, %s33
      %p63 = scmp.eq.s32.totalorder %s62, 0
      %s65 = sadd.s32 %s64, 1
      %s66 = scalar_select %p63, %s64, %s65
      %p69 = pneg %p63
      %p70 = scmp.eq.s32.totalorder %s14, 1
      %p71 = por %p69, %p70
      %p72 = scmp.ne.s32.totalorder %s64, %s67
      %p73 = scmp.eq.s32.totalorder %s14, 0
      %p74 = por %p72, %p73
      %p75 = scmp.ne.s32.totalorder %s64, %s67
      %p76 = scmp.eq.s32.totalorder %s19, 1
      %p77 = por %p75, %p76
      %p78 = scmp.ne.s32.totalorder %s67, %s68
      %p79 = scmp.eq.s32.totalorder %s19, 0
      %p80 = por %p78, %p79
      %p81 = scmp.ne.s32.totalorder %s67, %s68
      %p82 = scmp.eq.s32.totalorder %s20, 1
      %p83 = por %p81, %p82
      %p85 = scmp.ne.s32.totalorder %s68, %s84
      %p86 = scmp.eq.s32.totalorder %s20, 0
      %p87 = por %p85, %p86
      %s88 = ssub.s32 %s22, %s29
      %s89 = ssub.s32 %s21, %s33
      %s90 = sor.u32 %s88, %s89
      %p91 = scmp.eq.s32.totalorder %s90, 0
      %s93 = sadd.s32 %s92, 1
      %s94 = scalar_select %p91, %s92, %s93
      %p97 = pneg %p91
      %p98 = scmp.eq.s32.totalorder %s14, 1
      %p99 = por %p97, %p98
      %p100 = scmp.ne.s32.totalorder %s92, %s95
      %p101 = scmp.eq.s32.totalorder %s14, 0
      %p102 = por %p100, %p101
      %p103 = scmp.ne.s32.totalorder %s92, %s95
      %p104 = scmp.eq.s32.totalorder %s19, 1
      %p105 = por %p103, %p104
      %p106 = scmp.ne.s32.totalorder %s95, %s96
      %p107 = scmp.eq.s32.totalorder %s19, 0
      %p108 = por %p106, %p107
      %p109 = scmp.ne.s32.totalorder %s95, %s96
      %p110 = scmp.eq.s32.totalorder %s20, 1
      %p111 = por %p109, %p110
      %p113 = scmp.ne.s32.totalorder %s96, %s112
      %p114 = scmp.eq.s32.totalorder %s20, 0
      %p115 = por %p113, %p114
      %p116 = scmp.le.s32.totalorder 1, %s14
      %p117 = scmp.lt.s32.totalorder %s14, 3
      %p118 = pnand %p116, %p117
      %p119 = pneg %p118
      // Predicated region
      $region9: #{tpu_custom_call.1} parent=5 // pred_check
        _
      $region10: #{tpu_custom_call.1} parent=5 // pred_check_branch
        %121 = sbr.rel (%p118) target = $region12
      $region11: #{tpu_custom_call.1} parent=5 // pred_region
        %s122 = ssub.s32 %s14, 1
        // Predicated region
        $region13: #{tpu_custom_call.1} parent=11 // pred_check
          %p123 = pneg %p80
        $region14: #{tpu_custom_call.1} parent=11 // pred_check_branch
          %125 = sbr.rel (%p123) target = $region16
        $region15: #{tpu_custom_call.1} parent=11 // pred_region
          %p126 = scmp.lt.s32.totalorder %s23, 0
          %s127 = scalar_select %p126, %s23, 0
          %s128 = smul.addr %s127, 2
          %s129 = scalar_lea.vmem %s1, %s128
        $region16: #{tpu_custom_call.1} parent=11 // pred_fallthru
          _
      $region12: #{tpu_custom_call.1} parent=5 // pred_fallthru
        _
      %p130 = scmp.lt.s32.totalorder %s14, 2
      // Predicated region
      $region17: #{tpu_custom_call.1} parent=5 // pred_check
        %p131 = pneg %p130
      $region18: #{tpu_custom_call.1} parent=5 // pred_check_branch
        %133 = sbr.rel (%p131) target = $region20
      $region19: #{tpu_custom_call.1} parent=5 // pred_region
        // Predicated region
        $region21: #{tpu_custom_call.1} parent=19 // pred_check
          %p134 = pneg %p48
        $region22: #{tpu_custom_call.1} parent=19 // pred_check_branch
          %136 = sbr.rel (%p134) target = $region24
        $region23: #{tpu_custom_call.1} parent=19 // pred_region
          %s137 = sand.u32 %s38, 1
          %s138 = scalar_lea.sflag [#allocation3], %s137
          %s139 = sand.u32 %s38, 1
          %s140 = smul.addr %s139, 2
          %s141 = scalar_lea.vmem [#allocation2], %s140
          %s143 = ssub.s32 32, 32
          %144 = vsyncadd %s138, %s143
          %s145 = smul.addr %s21, 2
          %s146 = smul.addr %s22, 2
          %s147 = sadd.s32 %s145, %s146
          %s148 = smul.addr %s147, 16
          %s149 = scalar_lea.hbm %s0, %s148
          %s151 = sshll.u32 %s141, 4
          %s152 = int_to_ptr.vmem [resolvable:$true] %s151
          %154 = dma.hbm_to_vmem [thread:$0]  %s149, 32, %s152, %s138
        $region24: #{tpu_custom_call.1} parent=19 // pred_fallthru
          _
      $region20: #{tpu_custom_call.1} parent=5 // pred_fallthru
        _
      %p155 = scmp.le.s32.totalorder 1, %s14
      %p156 = scmp.lt.s32.totalorder %s14, 3
      %p157 = pnand %p155, %p156
      %p158 = pneg %p157
      // Predicated region
      $region25: #{tpu_custom_call.1} parent=5 // pred_check
        _
      $region26: #{tpu_custom_call.1} parent=5 // pred_check_branch
        %160 = sbr.rel (%p157) target = $region28
      $region27: #{tpu_custom_call.1} parent=5 // pred_region
        %s161 = ssub.s32 %s14, 1
        %s162 = sand.u32 %s41, 1
        %s163 = scalar_lea.sflag [#allocation3], %s162
        %s164 = sand.u32 %s41, 1
        %s165 = smul.addr %s164, 2
        %s166 = scalar_lea.vmem [#allocation2], %s165
        // Predicated region
        $region29: #{tpu_custom_call.1} parent=27 // pred_check
          %p167 = pneg %p54
        $region30: #{tpu_custom_call.1} parent=27 // pred_check_branch
          %169 = sbr.rel (%p167) target = $region32
        $region31: #{tpu_custom_call.1} parent=27 // pred_region
          %170 = dma.done %s163, 32
        $region32: #{tpu_custom_call.1} parent=27 // pred_fallthru
          _
        %s171 = sand.u32 %s41, 1
        %s172 = scalar_lea.sflag [#allocation3], %s171
        %s173 = sand.u32 %s41, 1
        %s174 = smul.addr %s173, 2
        %s175 = scalar_lea.vmem [#allocation2], %s174
        %p176 = pneg %p54
        %p177 = pneg %p51
        %p178 = scmp.lt.s32.totalorder %s23, 0
        %s179 = scalar_select %p178, %s23, 0
        %s180 = smul.addr %s179, 2
        %s181 = scalar_lea.vmem %s1, %s180
        %p182 = pneg %p80
        %p183 = pneg %p77
        %p184 = pneg %p108
        %p185 = pneg %p105
        %s186 = sand.u32 %s95, 1
        %s187 = scalar_lea.sflag [#allocation4], %s186
        %s188 = sand.u32 %s95, 1
        %s189 = smul.addr %s188, 2
        %s190 = scalar_lea.vmem [#allocation5], %s189
        %p191 = scmp.lt.s32.totalorder %s23, 0
        %s192 = scalar_select %p191, %s23, 0
        %s193 = smul.addr %s192, 2
        %s194 = scalar_lea.vmem %s1, %s193
        %v195 = vld [vmem:[%s166] sm:$0x3]
        %v196 = vmul.f32 %v195, 5.656854
        %v197 = vld [vmem:[%s194] sm:$0x3]
        %v198 = vadd.f32 %v196, %v197
        %v199 = vlaneseq
        %vm200 = vcmp.ge.s32.totalorder %v199, 0
        %vm201 = vcmp.lt.s32.totalorder %v199, 256
        %vm202 = vmand %vm200, %vm201
        %203 = vst.msk [vmem:[%s190] sm:$0x3] %vm202, %v198
        %s204 = sand.u32 %s95, 1
        %s205 = scalar_lea.sflag [#allocation4], %s204
        %s206 = sand.u32 %s95, 1
        %s207 = smul.addr %s206, 2
        %s208 = scalar_lea.vmem [#allocation5], %s207
        // Predicated region
        $region33: #{tpu_custom_call.1} parent=27 // pred_check
          %p209 = pneg %p105
        $region34: #{tpu_custom_call.1} parent=27 // pred_check_branch
          %211 = sbr.rel (%p209) target = $region36
        $region35: #{tpu_custom_call.1} parent=27 // pred_region
          %s213 = ssub.s32 32, 32
          %214 = vsyncadd %s205, %s213
          %s215 = smul.addr %s23, 2
          %s216 = smul.addr %s24, 2
          %s217 = sadd.s32 %s215, %s216
          %s218 = smul.addr %s217, 16
          %s219 = scalar_lea.hbm %s2, %s218
          %s221 = sshll.u32 %s208, 4
          %s222 = int_to_ptr.vmem [resolvable:$true] %s221
          %224 = dma.vmem_to_hbm [thread:$0]  %s222, 32, %s219, %s205
        $region36: #{tpu_custom_call.1} parent=27 // pred_fallthru
          _
      $region28: #{tpu_custom_call.1} parent=5 // pred_fallthru
        _
      %p225 = scmp.le.s32.totalorder 2, %s14
      // Predicated region
      $region37: #{tpu_custom_call.1} parent=5 // pred_check
        %p226 = pneg %p225
      $region38: #{tpu_custom_call.1} parent=5 // pred_check_branch
        %228 = sbr.rel (%p226) target = $region40
      $region39: #{tpu_custom_call.1} parent=5 // pred_region
        %s229 = ssub.s32 %s14, 2
        // Predicated region
        $region41: #{tpu_custom_call.1} parent=39 // pred_check
          %p230 = pneg %p111
        $region42: #{tpu_custom_call.1} parent=39 // pred_check_branch
          %232 = sbr.rel (%p230) target = $region44
        $region43: #{tpu_custom_call.1} parent=39 // pred_region
          %s233 = sand.u32 %s96, 1
          %s234 = scalar_lea.sflag [#allocation4], %s233
          %s235 = sand.u32 %s96, 1
          %s236 = smul.addr %s235, 2
          %s237 = scalar_lea.vmem [#allocation5], %s236
          %238 = dma.done %s234, 32
        $region44: #{tpu_custom_call.1} parent=39 // pred_fallthru
          _
      $region40: #{tpu_custom_call.1} parent=5 // pred_fallthru
        _
    $region6: #{tpu_custom_call.1} parent=1 // loop_footer
      %s18 = sadd.s32 1, %s14
    $region7: #{tpu_custom_call.1} parent=1 // loop_footer_branch
      %13 = sbr.rel target = $region3
    $region8: #{tpu_custom_call.1} parent=1 // loop_exit
      _
    %239 = vsyncpa [#allocation3], 1
    %s240 = scalar_lea.sflag [#allocation3], 1
    %241 = vsyncpa %s240, 1
    %242 = vsyncpa [#allocation4], 1
    %s243 = scalar_lea.sflag [#allocation4], 1
    %244 = vsyncpa %s243, 1

</llo_original>
